<compile_context>
chip_gen: v5e
topology: v5e:2x2
jax: 0.10.0
libtpu: 0.0.40
codegen_flags: <defaults>
</compile_context>

<pallas_src>
import functools

import jax
import jax.numpy as jnp
from jax import lax
from jax.experimental import pallas as pl
from jax.experimental.pallas import tpu as pltpu

EPS = 1e-5          # nn.InstanceNorm1d default eps
NEG_SLOPE = 0.2     # nn.LeakyReLU(0.2)


def _resblock_kernel(x_ref, w1_ref, w2_ref, o_ref, *, l_true):
    Bb, C, Lp = x_ref.shape                 # (b_blk, C_pad, L_pad)
    padded = Lp != l_true
    inv_l = 1.0 / float(l_true)

    # Hoisted once per grid step (not per sample).
    col = lax.broadcasted_iota(jnp.int32, (1, Lp), 1)      # lane index
    first_col = col == 0
    last_col = col == (l_true - 1)
    valid = (col < l_true) if padded else None

    # Weight taps (tap k multiplies x[l + k - 1]); loop-invariant loads.
    w1_0, w1_1, w1_2 = w1_ref[0], w1_ref[1], w1_ref[2]
    w2_0, w2_1, w2_2 = w2_ref[0], w2_ref[1], w2_ref[2]

    def conv3(h, wk0, wk1, wk2):
        # 'same' 3-tap conv as three accumulated MXU matmuls (no concat temp).
        h_prev = jnp.where(first_col, 0.0, pltpu.roll(h, shift=1, axis=1))
        # pltpu.roll needs shift >= 0: left-roll by 1 == roll by Lp - 1.
        h_next = jnp.where(last_col, 0.0, pltpu.roll(h, shift=Lp - 1, axis=1))
        y = jnp.dot(wk1, h, preferred_element_type=jnp.float32)
        y = y + jnp.dot(wk0, h_prev, preferred_element_type=jnp.float32)
        y = y + jnp.dot(wk2, h_next, preferred_element_type=jnp.float32)
        if padded:
            y = jnp.where(valid, y, 0.0)    # keep padded columns exactly zero
        return y

    def inorm(h):
        # InstanceNorm1d (affine=False), biased variance, two-pass for accuracy.
        mean = jnp.sum(h, axis=-1, keepdims=True) * inv_l
        c = h - mean
        if padded:
            c = jnp.where(valid, c, 0.0)
        var = jnp.sum(c * c, axis=-1, keepdims=True) * inv_l
        return c * lax.rsqrt(var + EPS)

    def body(b, carry):
        h = x_ref[b].astype(jnp.float32)    # (C_pad, L_pad)
        h = conv3(h, w1_0, w1_1, w1_2)
        h = inorm(h)
        h = jnp.where(h > 0, h, NEG_SLOPE * h)   # LeakyReLU(0.2)
        h = conv3(h, w2_0, w2_1, w2_2)
        h = inorm(h)
        # Residual add — re-read x from the ref to keep live ranges short.
        o_ref[b] = (x_ref[b].astype(jnp.float32) + h).astype(o_ref.dtype)
        return carry

    if Bb == 1:
        body(0, 0)
    else:
        unroll = 2 if Bb % 2 == 0 else 1
        lax.fori_loop(0, Bb, body, 0, unroll=unroll)


def _round_up(v, m):
    return (v + m - 1) // m * m


def _choose_batch_block(N, per_sample_bytes, target_bytes=2 << 20, min_steps=8):
    """~2 MiB blocks (amortize the ~0.35us/step overhead, stay inside v5e's
    16 MiB scoped-VMEM default with double-buffered in+out), while keeping at
    least min(min_steps, N) grid steps for megacore sharding + DMA overlap."""
    b = max(1, min(N, target_bytes // max(1, per_sample_bytes)))
    want_steps = min(min_steps, N)
    b = max(1, min(b, N // want_steps))
    return b


def residual_block(x, w1, b1, w2, b2):
    """x: (N, C, L) f32; w*: (C, C, 3) f32 (PyTorch OIK); b*: (C,).

    Conv biases are mathematically dead here: each conv feeds an affine=False
    InstanceNorm1d using instance statistics (PyTorch default,
    track_running_stats=False), so the per-channel mean subtraction cancels
    any per-channel constant exactly. Accepted for signature parity only.
    """
    del b1, b2
    N, C, L = x.shape
    itemsize = jnp.dtype(x.dtype).itemsize

    C_pad = _round_up(C, 8)
    L_pad = _round_up(L, 128)

    b_blk = _choose_batch_block(N, C_pad * L_pad * itemsize)
    steps = (N + b_blk - 1) // b_blk
    N_pad = steps * b_blk

    def prep_w(w):
        # (C_out, C_in, 3) -> (3, C_out, C_in), zero-padded channels.
        wt = jnp.transpose(w.astype(jnp.float32), (2, 0, 1))
        if C_pad != C:
            wt = jnp.pad(wt, ((0, 0), (0, C_pad - C), (0, C_pad - C)))
        return wt

    w1s, w2s = prep_w(w1), prep_w(w2)

    xp = x
    if (N_pad, C_pad, L_pad) != (N, C, L):
        xp = jnp.pad(x, ((0, N_pad - N), (0, C_pad - C), (0, L_pad - L)))

    out = pl.pallas_call(
        functools.partial(_resblock_kernel, l_true=L),
        out_shape=jax.ShapeDtypeStruct((N_pad, C_pad, L_pad), x.dtype),
        grid=(steps,),
        in_specs=[
            pl.BlockSpec((b_blk, C_pad, L_pad), lambda n: (n, 0, 0)),
            pl.BlockSpec((3, C_pad, C_pad), lambda n: (0, 0, 0)),   # resident
            pl.BlockSpec((3, C_pad, C_pad), lambda n: (0, 0, 0)),   # resident
        ],
        out_specs=pl.BlockSpec((b_blk, C_pad, L_pad), lambda n: (n, 0, 0)),
        compiler_params=pltpu.CompilerParams(
            dimension_semantics=("parallel",),
            vmem_limit_bytes=32 * 1024 * 1024,
        ),
    )(xp, w1s, w2s)

    if (N_pad, C_pad, L_pad) != (N, C, L):
        out = out[:N, :C, :L]
    return out


# ---------------- pure-JAX reference (correctness check) ----------------
def _conv1d_ref(x, w, b):
    y = lax.conv_general_dilated(
        x, w, window_strides=(1,), padding=((1, 1),),
        dimension_numbers=("NCH", "OIH", "NCH"))
    return y + b[None, :, None]


def _instance_norm_ref(x):
    mean = jnp.mean(x, axis=-1, keepdims=True)
    var = jnp.mean((x - mean) ** 2, axis=-1, keepdims=True)
    return (x - mean) * lax.rsqrt(var + EPS)


def residual_block_ref(x, w1, b1, w2, b2):
    h = _conv1d_ref(x, w1, b1)
    h = _instance_norm_ref(h)
    h = jnp.where(h > 0, h, NEG_SLOPE * h)
    h = _conv1d_ref(h, w2, b2)
    h = _instance_norm_ref(h)
    return x + h


def _run_case(key, N, C, L):
    kx, kw1, kb1, kw2, kb2 = jax.random.split(key, 5)
    x = jax.random.normal(kx, (N, C, L), dtype=jnp.float32)
    # Deterministic PyTorch-style init: U(-bound, bound), bound = 1/sqrt(C*k)
    bound = 1.0 / (C * 3) ** 0.5
    w1 = jax.random.uniform(kw1, (C, C, 3), jnp.float32, -bound, bound)
    b1 = jax.random.uniform(kb1, (C,), jnp.float32, -bound, bound)
    w2 = jax.random.uniform(kw2, (C, C, 3), jnp.float32, -bound, bound)
    b2 = jax.random.uniform(kb2, (C,), jnp.float32, -bound, bound)

    out = jax.block_until_ready(residual_block(x, w1, b1, w2, b2))
    ref = residual_block_ref(x, w1, b1, w2, b2)
    assert out.shape == (N, C, L)
    assert jnp.allclose(out, ref, atol=2e-4, rtol=2e-4), (
        f"mismatch vs reference at {(N, C, L)}: "
        f"max abs err {jnp.max(jnp.abs(out - ref))}")


if __name__ == "__main__":
    key = jax.random.PRNGKey(0)
    k1, k2, k3 = jax.random.split(key, 3)
    _run_case(k1, N=2, C=8, L=128)    # aligned shapes, single-sample blocks
    _run_case(k2, N=3, C=5, L=50)     # exercises N/C/L padding + length masks
    _run_case(k3, N=32, C=8, L=128)   # exercises multi-sample fori_loop path
    print("KERNEL_OK")
</pallas_src>

<mosaic_0001>
module attributes {stable_mosaic.version = 11 : i64} {
  func.func @_resblock_kernel(%arg0: i32, %arg1: memref<1x8x128xf32, #tpu.memory_space<vmem>>, %arg2: memref<3x8x8xf32, #tpu.memory_space<vmem>>, %arg3: memref<3x8x8xf32, #tpu.memory_space<vmem>>, %arg4: memref<1x8x128xf32, #tpu.memory_space<vmem>>) attributes {dimension_semantics = [#tpu.dimension_semantics<parallel>], iteration_bounds = array<i64: 2>, scalar_prefetch = 0 : i64, scratch_operands = 0 : i64, tpu.core_type = #tpu.core_type<tc>, window_params = [{transform_indices = @transform_0, window_bounds = array<i64: 1, 8, 128>}, {pipeline_mode = #tpu.pipeline_mode<synchronous>, transform_indices = @transform_1, window_bounds = array<i64: 3, 8, 8>}, {pipeline_mode = #tpu.pipeline_mode<synchronous>, transform_indices = @transform_2, window_bounds = array<i64: 3, 8, 8>}, {transform_indices = @transform_3, window_bounds = array<i64: 1, 8, 128>}]} {
    %0 = tpu.iota {dimensions = array<i32: 1>} : vector<1x128xi32>
    %c0_i32 = arith.constant 0 : i32
    %1 = vector.broadcast %c0_i32 : i32 to vector<1x128xi32>
    %2 = arith.cmpi eq, %0, %1 : vector<1x128xi32>
    %c127_i32 = arith.constant 127 : i32
    %3 = vector.broadcast %c127_i32 : i32 to vector<1x128xi32>
    %4 = arith.cmpi eq, %0, %3 : vector<1x128xi32>
    %c0 = arith.constant 0 : index
    %c0_0 = arith.constant 0 : index
    %c0_1 = arith.constant 0 : index
    %5 = vector.load %arg2[%c0, %c0_0, %c0_1] : memref<3x8x8xf32, #tpu.memory_space<vmem>>, vector<1x8x8xf32>
    %6 = vector.shape_cast %5 : vector<1x8x8xf32> to vector<8x8xf32>
    %c1 = arith.constant 1 : index
    %c0_2 = arith.constant 0 : index
    %c0_3 = arith.constant 0 : index
    %7 = vector.load %arg2[%c1, %c0_2, %c0_3] : memref<3x8x8xf32, #tpu.memory_space<vmem>>, vector<1x8x8xf32>
    %8 = vector.shape_cast %7 : vector<1x8x8xf32> to vector<8x8xf32>
    %c2 = arith.constant 2 : index
    %c0_4 = arith.constant 0 : index
    %c0_5 = arith.constant 0 : index
    %9 = vector.load %arg2[%c2, %c0_4, %c0_5] : memref<3x8x8xf32, #tpu.memory_space<vmem>>, vector<1x8x8xf32>
    %10 = vector.shape_cast %9 : vector<1x8x8xf32> to vector<8x8xf32>
    %c0_6 = arith.constant 0 : index
    %c0_7 = arith.constant 0 : index
    %c0_8 = arith.constant 0 : index
    %11 = vector.load %arg3[%c0_6, %c0_7, %c0_8] : memref<3x8x8xf32, #tpu.memory_space<vmem>>, vector<1x8x8xf32>
    %12 = vector.shape_cast %11 : vector<1x8x8xf32> to vector<8x8xf32>
    %c1_9 = arith.constant 1 : index
    %c0_10 = arith.constant 0 : index
    %c0_11 = arith.constant 0 : index
    %13 = vector.load %arg3[%c1_9, %c0_10, %c0_11] : memref<3x8x8xf32, #tpu.memory_space<vmem>>, vector<1x8x8xf32>
    %14 = vector.shape_cast %13 : vector<1x8x8xf32> to vector<8x8xf32>
    %c2_12 = arith.constant 2 : index
    %c0_13 = arith.constant 0 : index
    %c0_14 = arith.constant 0 : index
    %15 = vector.load %arg3[%c2_12, %c0_13, %c0_14] : memref<3x8x8xf32, #tpu.memory_space<vmem>>, vector<1x8x8xf32>
    %16 = vector.shape_cast %15 : vector<1x8x8xf32> to vector<8x8xf32>
    %c0_15 = arith.constant 0 : index
    %c0_16 = arith.constant 0 : index
    %c0_17 = arith.constant 0 : index
    %17 = vector.load %arg1[%c0_15, %c0_16, %c0_17] : memref<1x8x128xf32, #tpu.memory_space<vmem>>, vector<1x8x128xf32>
    %18 = vector.shape_cast %17 : vector<1x8x128xf32> to vector<8x128xf32>
    %c1_i32 = arith.constant 1 : i32
    %19 = tpu.dynamic_rotate %18 by %c1_i32 dim 1 : vector<8x128xf32>, i32 -> vector<8x128xf32>
    %cst = arith.constant 0.000000e+00 : f32
    %20 = vector.shape_cast %2 : vector<1x128xi1> to vector<1x128xi1>
    %21 = vector.broadcast %20 : vector<1x128xi1> to vector<8x128xi1>
    %22 = vector.broadcast %cst : f32 to vector<8x128xf32>
    %23 = arith.select %21, %22, %19 : vector<8x128xi1>, vector<8x128xf32>
    %c127_i32_18 = arith.constant 127 : i32
    %24 = tpu.dynamic_rotate %18 by %c127_i32_18 dim 1 : vector<8x128xf32>, i32 -> vector<8x128xf32>
    %cst_19 = arith.constant 0.000000e+00 : f32
    %25 = vector.shape_cast %4 : vector<1x128xi1> to vector<1x128xi1>
    %26 = vector.broadcast %25 : vector<1x128xi1> to vector<8x128xi1>
    %27 = vector.broadcast %cst_19 : f32 to vector<8x128xf32>
    %28 = arith.select %26, %27, %24 : vector<8x128xi1>, vector<8x128xf32>
    %cst_20 = arith.constant dense<0.000000e+00> : vector<8x128xf32>
    %29 = tpu.matmul %8, %18, %cst_20 {dimension_numbers = #tpu.dot_dimension_numbers<[1], [0], [0], [1], [0, 0, 1, 1], [], []>} : vector<8x8xf32>, vector<8x128xf32>, vector<8x128xf32> -> vector<8x128xf32>
    %cst_21 = arith.constant dense<0.000000e+00> : vector<8x128xf32>
    %30 = tpu.matmul %6, %23, %cst_21 {dimension_numbers = #tpu.dot_dimension_numbers<[1], [0], [0], [1], [0, 0, 1, 1], [], []>} : vector<8x8xf32>, vector<8x128xf32>, vector<8x128xf32> -> vector<8x128xf32>
    %31 = arith.addf %29, %30 : vector<8x128xf32>
    %cst_22 = arith.constant dense<0.000000e+00> : vector<8x128xf32>
    %32 = tpu.matmul %10, %28, %cst_22 {dimension_numbers = #tpu.dot_dimension_numbers<[1], [0], [0], [1], [0, 0, 1, 1], [], []>} : vector<8x8xf32>, vector<8x128xf32>, vector<8x128xf32> -> vector<8x128xf32>
    %33 = arith.addf %31, %32 : vector<8x128xf32>
    %cst_23 = arith.constant dense<0.000000e+00> : vector<8xf32>
    %34 = vector.multi_reduction <add>, %33, %cst_23 [1] : vector<8x128xf32> to vector<8xf32>
    %35 = vector.shape_cast %34 : vector<8xf32> to vector<8x1xf32>
    %cst_24 = arith.constant 7.812500e-03 : f32
    %36 = vector.broadcast %cst_24 : f32 to vector<8x1xf32>
    %37 = arith.mulf %35, %36 : vector<8x1xf32>
    %38 = vector.broadcast %37 : vector<8x1xf32> to vector<8x128xf32>
    %39 = arith.subf %33, %38 : vector<8x128xf32>
    %40 = arith.mulf %39, %39 : vector<8x128xf32>
    %cst_25 = arith.constant dense<0.000000e+00> : vector<8xf32>
    %41 = vector.multi_reduction <add>, %40, %cst_25 [1] : vector<8x128xf32> to vector<8xf32>
    %42 = vector.shape_cast %41 : vector<8xf32> to vector<8x1xf32>
    %cst_26 = arith.constant 7.812500e-03 : f32
    %43 = vector.broadcast %cst_26 : f32 to vector<8x1xf32>
    %44 = arith.mulf %42, %43 : vector<8x1xf32>
    %cst_27 = arith.constant 9.99999974E-6 : f32
    %45 = vector.broadcast %cst_27 : f32 to vector<8x1xf32>
    %46 = arith.addf %44, %45 : vector<8x1xf32>
    %47 = math.rsqrt %46 : vector<8x1xf32>
    %48 = vector.broadcast %47 : vector<8x1xf32> to vector<8x128xf32>
    %49 = arith.mulf %39, %48 : vector<8x128xf32>
    %cst_28 = arith.constant 0.000000e+00 : f32
    %50 = vector.broadcast %cst_28 : f32 to vector<8x128xf32>
    %51 = arith.cmpf ogt, %49, %50 : vector<8x128xf32>
    %cst_29 = arith.constant 2.000000e-01 : f32
    %52 = vector.broadcast %cst_29 : f32 to vector<8x128xf32>
    %53 = arith.mulf %52, %49 : vector<8x128xf32>
    %54 = arith.select %51, %49, %53 : vector<8x128xi1>, vector<8x128xf32>
    %c1_i32_30 = arith.constant 1 : i32
    %55 = tpu.dynamic_rotate %54 by %c1_i32_30 dim 1 : vector<8x128xf32>, i32 -> vector<8x128xf32>
    %cst_31 = arith.constant 0.000000e+00 : f32
    %56 = vector.shape_cast %2 : vector<1x128xi1> to vector<1x128xi1>
    %57 = vector.broadcast %56 : vector<1x128xi1> to vector<8x128xi1>
    %58 = vector.broadcast %cst_31 : f32 to vector<8x128xf32>
    %59 = arith.select %57, %58, %55 : vector<8x128xi1>, vector<8x128xf32>
    %c127_i32_32 = arith.constant 127 : i32
    %60 = tpu.dynamic_rotate %54 by %c127_i32_32 dim 1 : vector<8x128xf32>, i32 -> vector<8x128xf32>
    %cst_33 = arith.constant 0.000000e+00 : f32
    %61 = vector.shape_cast %4 : vector<1x128xi1> to vector<1x128xi1>
    %62 = vector.broadcast %61 : vector<1x128xi1> to vector<8x128xi1>
    %63 = vector.broadcast %cst_33 : f32 to vector<8x128xf32>
    %64 = arith.select %62, %63, %60 : vector<8x128xi1>, vector<8x128xf32>
    %cst_34 = arith.constant dense<0.000000e+00> : vector<8x128xf32>
    %65 = tpu.matmul %14, %54, %cst_34 {dimension_numbers = #tpu.dot_dimension_numbers<[1], [0], [0], [1], [0, 0, 1, 1], [], []>} : vector<8x8xf32>, vector<8x128xf32>, vector<8x128xf32> -> vector<8x128xf32>
    %cst_35 = arith.constant dense<0.000000e+00> : vector<8x128xf32>
    %66 = tpu.matmul %12, %59, %cst_35 {dimension_numbers = #tpu.dot_dimension_numbers<[1], [0], [0], [1], [0, 0, 1, 1], [], []>} : vector<8x8xf32>, vector<8x128xf32>, vector<8x128xf32> -> vector<8x128xf32>
    %67 = arith.addf %65, %66 : vector<8x128xf32>
    %cst_36 = arith.constant dense<0.000000e+00> : vector<8x128xf32>
    %68 = tpu.matmul %16, %64, %cst_36 {dimension_numbers = #tpu.dot_dimension_numbers<[1], [0], [0], [1], [0, 0, 1, 1], [], []>} : vector<8x8xf32>, vector<8x128xf32>, vector<8x128xf32> -> vector<8x128xf32>
    %69 = arith.addf %67, %68 : vector<8x128xf32>
    %cst_37 = arith.constant dense<0.000000e+00> : vector<8xf32>
    %70 = vector.multi_reduction <add>, %69, %cst_37 [1] : vector<8x128xf32> to vector<8xf32>
    %71 = vector.shape_cast %70 : vector<8xf32> to vector<8x1xf32>
    %cst_38 = arith.constant 7.812500e-03 : f32
    %72 = vector.broadcast %cst_38 : f32 to vector<8x1xf32>
    %73 = arith.mulf %71, %72 : vector<8x1xf32>
    %74 = vector.broadcast %73 : vector<8x1xf32> to vector<8x128xf32>
    %75 = arith.subf %69, %74 : vector<8x128xf32>
    %76 = arith.mulf %75, %75 : vector<8x128xf32>
    %cst_39 = arith.constant dense<0.000000e+00> : vector<8xf32>
    %77 = vector.multi_reduction <add>, %76, %cst_39 [1] : vector<8x128xf32> to vector<8xf32>
    %78 = vector.shape_cast %77 : vector<8xf32> to vector<8x1xf32>
    %cst_40 = arith.constant 7.812500e-03 : f32
    %79 = vector.broadcast %cst_40 : f32 to vector<8x1xf32>
    %80 = arith.mulf %78, %79 : vector<8x1xf32>
    %cst_41 = arith.constant 9.99999974E-6 : f32
    %81 = vector.broadcast %cst_41 : f32 to vector<8x1xf32>
    %82 = arith.addf %80, %81 : vector<8x1xf32>
    %83 = math.rsqrt %82 : vector<8x1xf32>
    %84 = vector.broadcast %83 : vector<8x1xf32> to vector<8x128xf32>
    %85 = arith.mulf %75, %84 : vector<8x128xf32>
    %c0_42 = arith.constant 0 : index
    %c0_43 = arith.constant 0 : index
    %c0_44 = arith.constant 0 : index
    %86 = vector.load %arg1[%c0_42, %c0_43, %c0_44] : memref<1x8x128xf32, #tpu.memory_space<vmem>>, vector<1x8x128xf32>
    %87 = vector.shape_cast %86 : vector<1x8x128xf32> to vector<8x128xf32>
    %88 = arith.addf %87, %85 : vector<8x128xf32>
    %c0_45 = arith.constant 0 : index
    %c0_46 = arith.constant 0 : index
    %c0_47 = arith.constant 0 : index
    %89 = vector.load %arg4[%c0_45, %c0_46, %c0_47] : memref<1x8x128xf32, #tpu.memory_space<vmem>>, vector<1x8x128xf32>
    %90 = vector.shape_cast %89 : vector<1x8x128xf32> to vector<8x128xf32>
    %91 = vector.shape_cast %88 : vector<8x128xf32> to vector<1x8x128xf32>
    tpu.vector_store %arg4[%c0_45, %c0_46, %c0_47], %91 {strides = array<i32>} : memref<1x8x128xf32, #tpu.memory_space<vmem>>, vector<1x8x128xf32>,
    return
  }
  func.func @transform_0(%arg0: i32) -> (i32, i32, i32) {
    %c0_i32 = arith.constant 0 : i32
    %c0_i32_0 = arith.constant 0 : i32
    %c0_i32_1 = arith.constant 0 : i32
    return %arg0, %c0_i32, %c0_i32_0 : i32, i32, i32
  }
  func.func @transform_1(%arg0: i32) -> (i32, i32, i32) {
    %c0_i32 = arith.constant 0 : i32
    %c0_i32_0 = arith.constant 0 : i32
    %c0_i32_1 = arith.constant 0 : i32
    %c0_i32_2 = arith.constant 0 : i32
    return %c0_i32, %c0_i32_0, %c0_i32_1 : i32, i32, i32
  }
  func.func @transform_2(%arg0: i32) -> (i32, i32, i32) {
    %c0_i32 = arith.constant 0 : i32
    %c0_i32_0 = arith.constant 0 : i32
    %c0_i32_1 = arith.constant 0 : i32
    %c0_i32_2 = arith.constant 0 : i32
    return %c0_i32, %c0_i32_0, %c0_i32_1 : i32, i32, i32
  }
  func.func @transform_3(%arg0: i32) -> (i32, i32, i32) {
    %c0_i32 = arith.constant 0 : i32
    %c0_i32_0 = arith.constant 0 : i32
    %c0_i32_1 = arith.constant 0 : i32
    return %arg0, %c0_i32, %c0_i32_0 : i32, i32, i32
  }
}

</mosaic_0001>

<llo_original>
// kernel: tpu_custom_call.1
$region0: #{tpu_custom_call.1}
  #allocation0 [shape = 'u32[]', space=smem, size = 0x4, offset = 0x4, fixed_abs, tag = 'smem constant byte address 0x4 - core index']
  #allocation1 [shape = 'u32[72,128]{1,0:T(1,128)}', space=vmem, size = 0x9000, scoped, tag = 'internal scratch']
  %s0 = inlined_call_operand.hbm [shape: f32[2,8,128], index: 0, kind: input, shape index: {}]
  %s1 = inlined_call_operand.hbm [shape: f32[3,8,8], index: 1, kind: input, shape index: {}]
  %s2 = inlined_call_operand.hbm [shape: f32[3,8,8], index: 2, kind: input, shape index: {}]
  %s3 = inlined_call_operand.hbm [shape: f32[2,8,128], index: 3, kind: output, shape index: {}]
  %s4 = sld [smem:[#allocation0]]
  $region57: #{tpu_custom_call.1} parent=0
    _
  %s6 = ssub.s32 1, %s4
  %s7 = scalar_select 0, %s6, %s4
  $region1: #{tpu_custom_call.1} parent=0
    #allocation2 [shape = 'u8[8192]{0}', space=vmem, size = 0x2000, scoped, tag = 'input window, operand 0']
    #allocation3 [shape = 's32[2]{0}', space=sflag, size = 0x8, scoped, tag = 'scoped memory for tpu_custom_call.1']
    #allocation4 [shape = 's32[2]{0}', space=sflag, size = 0x8, scoped, tag = 'scoped memory for tpu_custom_call.1']
    #allocation5 [shape = 'u8[12288]{0}', space=vmem, size = 0x3000, scoped, tag = 'input window, operand 1, single buffered']
    #allocation6 [shape = 's32[1]{0}', space=sflag, size = 0x4, scoped, tag = 'scoped memory for tpu_custom_call.1']
    #allocation7 [shape = 'u8[12288]{0}', space=vmem, size = 0x3000, scoped, tag = 'input window, operand 2, single buffered']
    #allocation8 [shape = 'u8[8192]{0}', space=vmem, size = 0x2000, scoped, tag = 'output window, operand 0']
    %8 = vsyncpa [#allocation3], 0
    %s9 = scalar_lea.sflag [#allocation3], 1
    %10 = vsyncpa %s9, 0
    %11 = vsyncpa [#allocation6], 0
    %12 = vsyncpa [#allocation4], 0
    %s13 = scalar_lea.sflag [#allocation4], 1
    %14 = vsyncpa %s13, 0
    loop: start=0, step=1, limit=4
    $region2: #{tpu_custom_call.1} parent=1 // loop_pre_header
      _
    $region3: #{tpu_custom_call.1} parent=1 // loop_header
      %s16 = sphi 0, %s20
      %p17 = scmp.ge.s32.totalorder %s16, 4
      %s26 = sphi 0, %s28
      %s29 = sphi 0, %s26
      %s30 = sphi 0, %s29
      %s46 = sphi 0, %s30
      %s50 = sphi 0, %s50
      %s52 = sphi 0, %s50
      %s53 = sphi 0, %s52
      %s67 = sphi 0, %s53
      %s71 = sphi 0, %s71
      %s73 = sphi 0, %s71
      %s74 = sphi 0, %s73
      %s88 = sphi 0, %s74
      %s94 = sphi 0, %s96
      %s97 = sphi 0, %s94
      %s98 = sphi 0, %s97
      %s114 = sphi 0, %s98
    $region4: #{tpu_custom_call.1} parent=1 // loop_header_branch
      %19 = sbr.rel (%p17) target = $region8
    $region5: #{tpu_custom_call.1} parent=1 // loop_body
      %s21 = ssub.s32 %s16, 1
      %s22 = ssub.s32 %s16, 2
      %s23 = sadd.s32 %s16, 1
      %s24 = ssub.s32 %s16, %s23
      %p25 = scmp.eq.s32.totalorder %s24, 0
      %s27 = sadd.s32 %s26, 1
      %s28 = scalar_select %p25, %s26, %s27
      %p31 = pneg %p25
      %p32 = scmp.eq.s32.totalorder %s16, 1
      %p33 = por %p31, %p32
      %p34 = scmp.ne.s32.totalorder %s26, %s29
      %p35 = scmp.eq.s32.totalorder %s16, 0
      %p36 = por %p34, %p35
      %p37 = scmp.ne.s32.totalorder %s26, %s29
      %p38 = scmp.eq.s32.totalorder %s21, 1
      %p39 = por %p37, %p38
      %p40 = scmp.ne.s32.totalorder %s29, %s30
      %p41 = scmp.eq.s32.totalorder %s21, 0
      %p42 = por %p40, %p41
      %p43 = scmp.ne.s32.totalorder %s29, %s30
      %p44 = scmp.eq.s32.totalorder %s22, 1
      %p45 = por %p43, %p44
      %p47 = scmp.ne.s32.totalorder %s30, %s46
      %p48 = scmp.eq.s32.totalorder %s22, 0
      %p49 = por %p47, %p48
      %s51 = sadd.s32 %s50, 1
      %p54 = scmp.eq.s32.totalorder %s16, 1
      %p55 = scmp.ne.s32.totalorder %s50, %s52
      %p56 = scmp.eq.s32.totalorder %s16, 0
      %p57 = por %p55, %p56
      %p58 = scmp.ne.s32.totalorder %s50, %s52
      %p59 = scmp.eq.s32.totalorder %s21, 1
      %p60 = por %p58, %p59
      %p61 = scmp.ne.s32.totalorder %s52, %s53
      %p62 = scmp.eq.s32.totalorder %s21, 0
      %p63 = por %p61, %p62
      %p64 = scmp.ne.s32.totalorder %s52, %s53
      %p65 = scmp.eq.s32.totalorder %s22, 1
      %p66 = por %p64, %p65
      %p68 = scmp.ne.s32.totalorder %s53, %s67
      %p69 = scmp.eq.s32.totalorder %s22, 0
      %p70 = por %p68, %p69
      %s72 = sadd.s32 %s71, 1
      %p75 = scmp.eq.s32.totalorder %s16, 1
      %p76 = scmp.ne.s32.totalorder %s71, %s73
      %p77 = scmp.eq.s32.totalorder %s16, 0
      %p78 = por %p76, %p77
      %p79 = scmp.ne.s32.totalorder %s71, %s73
      %p80 = scmp.eq.s32.totalorder %s21, 1
      %p81 = por %p79, %p80
      %p82 = scmp.ne.s32.totalorder %s73, %s74
      %p83 = scmp.eq.s32.totalorder %s21, 0
      %p84 = por %p82, %p83
      %p85 = scmp.ne.s32.totalorder %s73, %s74
      %p86 = scmp.eq.s32.totalorder %s22, 1
      %p87 = por %p85, %p86
      %p89 = scmp.ne.s32.totalorder %s74, %s88
      %p90 = scmp.eq.s32.totalorder %s22, 0
      %p91 = por %p89, %p90
      %s92 = ssub.s32 %s16, %s23
      %p93 = scmp.eq.s32.totalorder %s92, 0
      %s95 = sadd.s32 %s94, 1
      %s96 = scalar_select %p93, %s94, %s95
      %p99 = pneg %p93
      %p100 = scmp.eq.s32.totalorder %s16, 1
      %p101 = por %p99, %p100
      %p102 = scmp.ne.s32.totalorder %s94, %s97
      %p103 = scmp.eq.s32.totalorder %s16, 0
      %p104 = por %p102, %p103
      %p105 = scmp.ne.s32.totalorder %s94, %s97
      %p106 = scmp.eq.s32.totalorder %s21, 1
      %p107 = por %p105, %p106
      %p108 = scmp.ne.s32.totalorder %s97, %s98
      %p109 = scmp.eq.s32.totalorder %s21, 0
      %p110 = por %p108, %p109
      %p111 = scmp.ne.s32.totalorder %s97, %s98
      %p112 = scmp.eq.s32.totalorder %s22, 1
      %p113 = por %p111, %p112
      %p115 = scmp.ne.s32.totalorder %s98, %s114
      %p116 = scmp.eq.s32.totalorder %s22, 0
      %p117 = por %p115, %p116
      %p118 = scmp.le.s32.totalorder 1, %s16
      %p119 = scmp.lt.s32.totalorder %s16, 3
      %p120 = pnand %p118, %p119
      %p121 = pneg %p120
      // Predicated region
      $region9: #{tpu_custom_call.1} parent=5 // pred_check
        _
      $region10: #{tpu_custom_call.1} parent=5 // pred_check_branch
        %123 = sbr.rel (%p120) target = $region12
      $region11: #{tpu_custom_call.1} parent=5 // pred_region
        %s124 = ssub.s32 %s16, 1
        // Predicated region
        $region13: #{tpu_custom_call.1} parent=11 // pred_check
          %p125 = pneg %p63
        $region14: #{tpu_custom_call.1} parent=11 // pred_check_branch
          %127 = sbr.rel (%p125) target = $region16
        $region15: #{tpu_custom_call.1} parent=11 // pred_region
          %129 = vsyncadd [#allocation6], 0
          %s130 = sshll.u32 %s1, 4
          %s131 = int_to_ptr.hbm [resolvable:$true] %s130
          %s132 = sshll.u32 [#allocation5], 4
          %s133 = int_to_ptr.vmem [resolvable:$true] %s132
          %138 = dma.hbm_to_vmem [thread:$0]  %s131, 384, %s133, [#allocation6], 128, 128, 8
        $region16: #{tpu_custom_call.1} parent=11 // pred_fallthru
          _
        // Predicated region
        $region17: #{tpu_custom_call.1} parent=11 // pred_check
          %p139 = pneg %p84
        $region18: #{tpu_custom_call.1} parent=11 // pred_check_branch
          %141 = sbr.rel (%p139) target = $region20
        $region19: #{tpu_custom_call.1} parent=11 // pred_region
          %143 = vsyncadd [#allocation6], 0
          %s144 = sshll.u32 %s2, 4
          %s145 = int_to_ptr.hbm [resolvable:$true] %s144
          %s146 = sshll.u32 [#allocation7], 4
          %s147 = int_to_ptr.vmem [resolvable:$true] %s146
          %152 = dma.hbm_to_vmem [thread:$0]  %s145, 384, %s147, [#allocation6], 128, 128, 8
        $region20: #{tpu_custom_call.1} parent=11 // pred_fallthru
          _
      $region12: #{tpu_custom_call.1} parent=5 // pred_fallthru
        _
      %p153 = scmp.lt.s32.totalorder %s16, 2
      // Predicated region
      $region21: #{tpu_custom_call.1} parent=5 // pred_check
        %p154 = pneg %p153
      $region22: #{tpu_custom_call.1} parent=5 // pred_check_branch
        %156 = sbr.rel (%p154) target = $region24
      $region23: #{tpu_custom_call.1} parent=5 // pred_region
        // Predicated region
        $region25: #{tpu_custom_call.1} parent=23 // pred_check
          %p157 = pneg %p36
        $region26: #{tpu_custom_call.1} parent=23 // pred_check_branch
          %159 = sbr.rel (%p157) target = $region28
        $region27: #{tpu_custom_call.1} parent=23 // pred_region
          %s160 = sand.u32 %s26, 1
          %s161 = scalar_lea.sflag [#allocation3], %s160
          %s162 = sand.u32 %s26, 1
          %s163 = smul.addr %s162, 8
          %s164 = scalar_lea.vmem [#allocation2], %s163
          %166 = vsyncadd %s161, 0
          %s167 = smul.addr %s16, 8
          %s168 = scalar_lea.hbm %s0, %s167
          %s170 = sshll.u32 %s168, 4
          %s171 = int_to_ptr.hbm [resolvable:$true] %s170
          %s172 = sshll.u32 %s164, 4
          %s173 = int_to_ptr.vmem [resolvable:$true] %s172
          %175 = dma.hbm_to_vmem [thread:$0]  %s171, 128, %s173, %s161
        $region28: #{tpu_custom_call.1} parent=23 // pred_fallthru
          _
      $region24: #{tpu_custom_call.1} parent=5 // pred_fallthru
        _
      %p176 = scmp.le.s32.totalorder 1, %s16
      %p177 = scmp.lt.s32.totalorder %s16, 3
      %p178 = pnand %p176, %p177
      %p179 = pneg %p178
      // Predicated region
      $region29: #{tpu_custom_call.1} parent=5 // pred_check
        _
      $region30: #{tpu_custom_call.1} parent=5 // pred_check_branch
        %181 = sbr.rel (%p178) target = $region32
      $region31: #{tpu_custom_call.1} parent=5 // pred_region
        %s182 = ssub.s32 %s16, 1
        %s183 = sand.u32 %s29, 1
        %s184 = scalar_lea.sflag [#allocation3], %s183
        %s185 = sand.u32 %s29, 1
        %s186 = smul.addr %s185, 8
        %s187 = scalar_lea.vmem [#allocation2], %s186
        // Predicated region
        $region33: #{tpu_custom_call.1} parent=31 // pred_check
          %p188 = pneg %p42
        $region34: #{tpu_custom_call.1} parent=31 // pred_check_branch
          %190 = sbr.rel (%p188) target = $region36
        $region35: #{tpu_custom_call.1} parent=31 // pred_region
          %192 = dma.done %s184, 128
        $region36: #{tpu_custom_call.1} parent=31 // pred_fallthru
          _
        // Predicated region
        $region37: #{tpu_custom_call.1} parent=31 // pred_check
          %p193 = pneg %p63
        $region38: #{tpu_custom_call.1} parent=31 // pred_check_branch
          %195 = sbr.rel (%p193) target = $region40
        $region39: #{tpu_custom_call.1} parent=31 // pred_region
          %197 = dma.done [#allocation6], 384
        $region40: #{tpu_custom_call.1} parent=31 // pred_fallthru
          _
        // Predicated region
        $region41: #{tpu_custom_call.1} parent=31 // pred_check
          %p198 = pneg %p84
        $region42: #{tpu_custom_call.1} parent=31 // pred_check_branch
          %200 = sbr.rel (%p198) target = $region44
        $region43: #{tpu_custom_call.1} parent=31 // pred_region
          %202 = dma.done [#allocation6], 384
        $region44: #{tpu_custom_call.1} parent=31 // pred_fallthru
          _
        %s203 = sand.u32 %s29, 1
        %s204 = scalar_lea.sflag [#allocation3], %s203
        %s205 = sand.u32 %s29, 1
        %s206 = smul.addr %s205, 8
        %s207 = scalar_lea.vmem [#allocation2], %s206
        %p208 = pneg %p42
        %p209 = pneg %p39
        %p210 = pneg %p63
        %p211 = pneg %p60
        %p212 = pneg %p84
        %p213 = pneg %p81
        %p214 = pneg %p110
        %p215 = pneg %p107
        %s216 = sand.u32 %s97, 1
        %s217 = scalar_lea.sflag [#allocation4], %s216
        %s218 = sand.u32 %s97, 1
        %s219 = smul.addr %s218, 8
        %s220 = scalar_lea.vmem [#allocation8], %s219
        %v221 = vlaneseq
        %v222 = vand.u32 %v221, 127
        %vm223 = vcmp.eq.s32.totalorder %v222, 0
        %vm224 = vcmp.eq.s32.totalorder %v222, 127
        %v225 = vld [vmem:[#allocation5] sm:$0xff]
        %s226 = scalar_lea.vmem [#allocation5], 8
        %v227 = vld [vmem:[%s226] sm:$0xff]
        %s228 = scalar_lea.vmem [#allocation5], 16
        %v229 = vld [vmem:[%s228] sm:$0xff]
        %v230 = vld [vmem:[#allocation7] sm:$0xff]
        %s231 = scalar_lea.vmem [#allocation7], 8
        %v232 = vld [vmem:[%s231] sm:$0xff]
        %s233 = scalar_lea.vmem [#allocation7], 16
        %v234 = vld [vmem:[%s233] sm:$0xff]
        %v235 = vld [vmem:[%s187] sm:$0xff]
        %236 = vrot.lane.b32.xlu0 %v235, 1
        %v237 = vpop.permute.xlu0 %236
        %v238 = vsel %vm223, 1, 0
        %vm239 = vcmp.eq.s32.totalorder %v238, 1
        %v240 = vsel %vm239, 0.0, %v237
        %241 = vrot.lane.b32.xlu0 %v235, 127
        %v242 = vpop.permute.xlu0 %241
        %v243 = vsel %vm224, 1, 0
        %vm244 = vcmp.eq.s32.totalorder %v243, 1
        %v245 = vsel %vm244, 0.0, %v242
        %vm246 = vcmask 64512
        %v248 = vsel %vm246, %v225, 0
        %250 = vmatpush.msra.mxu0 0.0
        %251 = vmatpush.msra.mxu0 0.0
        %252 = vmatpush.msra.mxu0 0.0
        %253 = vmatpush.msra.mxu0 0.0
        %254 = vmatpush.msra.mxu0 0.0
        %255 = vmatpush.msra.mxu0 0.0
        %256 = vmatpush.msra.mxu0 0.0
        %257 = vmatpush.msra.mxu0 0.0
        %258 = vmatpush.msra.mxu0 0.0
        %259 = vmatpush.msra.mxu0 0.0
        %260 = vmatpush.msra.mxu0 0.0
        %261 = vmatpush.msra.mxu0 0.0
        %262 = vmatpush.msra.mxu0 0.0
        %263 = vmatpush.msra.mxu0 0.0
        %264 = vmatpush.msra.mxu0 0.0
        %265 = vmatpush.msra.mxu0 %v240
        %266 = vmatmul.f32.gmra.mxu0 %v248
        %v267 = vpop.f32.mrf.mxu0
        %v268 = vadd.f32 0.0, %v267
        %269 = vdwg.mxu0
        %v271 = vsel %vm246, %v227, 0
        %273 = vmatpush.msra.mxu0 0.0
        %274 = vmatpush.msra.mxu0 0.0
        %275 = vmatpush.msra.mxu0 0.0
        %276 = vmatpush.msra.mxu0 0.0
        %277 = vmatpush.msra.mxu0 0.0
        %278 = vmatpush.msra.mxu0 0.0
        %279 = vmatpush.msra.mxu0 0.0
        %280 = vmatpush.msra.mxu0 0.0
        %281 = vmatpush.msra.mxu0 0.0
        %282 = vmatpush.msra.mxu0 0.0
        %283 = vmatpush.msra.mxu0 0.0
        %284 = vmatpush.msra.mxu0 0.0
        %285 = vmatpush.msra.mxu0 0.0
        %286 = vmatpush.msra.mxu0 0.0
        %287 = vmatpush.msra.mxu0 0.0
        %288 = vmatpush.msra.mxu0 %v235
        %289 = vmatmul.f32.gmra.mxu0 %v271
        %v290 = vpop.f32.mrf.mxu0
        %v291 = vadd.f32 %v268, %v290
        %292 = vdwg.mxu0
        %v294 = vsel %vm246, %v229, 0
        %296 = vmatpush.msra.mxu0 0.0
        %297 = vmatpush.msra.mxu0 0.0
        %298 = vmatpush.msra.mxu0 0.0
        %299 = vmatpush.msra.mxu0 0.0
        %300 = vmatpush.msra.mxu0 0.0
        %301 = vmatpush.msra.mxu0 0.0
        %302 = vmatpush.msra.mxu0 0.0
        %303 = vmatpush.msra.mxu0 0.0
        %304 = vmatpush.msra.mxu0 0.0
        %305 = vmatpush.msra.mxu0 0.0
        %306 = vmatpush.msra.mxu0 0.0
        %307 = vmatpush.msra.mxu0 0.0
        %308 = vmatpush.msra.mxu0 0.0
        %309 = vmatpush.msra.mxu0 0.0
        %310 = vmatpush.msra.mxu0 0.0
        %311 = vmatpush.msra.mxu0 %v245
        %312 = vmatmul.f32.gmra.mxu0 %v294
        %v313 = vpop.f32.mrf.mxu0
        %v314 = vadd.f32 0.0, %v313
        %315 = vdwg.mxu0
        %v316 = vadd.f32 %v291, %v314
        %317 = vadd.xlane.f32.xlu0 %v316
        %v318 = vpop.xlane.xlu0 %317
        %v319 = vmul.f32 %v318, 0.0078125
        %v320 = vsub.f32 %v316, %v319
        %v321 = vmul.f32 %v320, %v320
        %322 = vadd.xlane.f32.xlu0 %v321
        %v323 = vpop.xlane.xlu0 %322
        %v324 = vmul.f32 %v323, 0.0078125
        %v325 = vadd.f32 %v324, 1e-05
        %v326 = vrsqrt.pop %v325
        %v327 = vmul.f32 %v326, %v325
        %v328 = vmul.f32 %v327, %v326
        %v329 = vmul.f32 0.5, %v328
        %v330 = vsub.f32 1.5, %v329
        %v331 = vmul.f32 %v326, %v330
        %vm332 = vweird.f32 %v325
        %vm333 = vweird.f32 %v326
        %vm334 = vmor %vm332, %vm333
        %v335 = vsel %vm334, %v326, %v331
        %v336 = vmul.f32 %v320, %v335
        %vm337 = vcmp.gt.f32.partialorder %v336, 0.0
        %v338 = vmul.f32 %v336, 0.2
        %v339 = vsel %vm337, %v336, %v338
        %340 = vrot.lane.b32.xlu0 %v339, 1
        %v341 = vpop.permute.xlu0 %340
        %v342 = vsel %vm239, 0.0, %v341
        %343 = vrot.lane.b32.xlu0 %v339, 127
        %v344 = vpop.permute.xlu0 %343
        %v345 = vsel %vm244, 0.0, %v344
        %v347 = vsel %vm246, %v230, 0
        %349 = vmatpush.msra.mxu0 0.0
        %350 = vmatpush.msra.mxu0 0.0
        %351 = vmatpush.msra.mxu0 0.0
        %352 = vmatpush.msra.mxu0 0.0
        %353 = vmatpush.msra.mxu0 0.0
        %354 = vmatpush.msra.mxu0 0.0
        %355 = vmatpush.msra.mxu0 0.0
        %356 = vmatpush.msra.mxu0 0.0
        %357 = vmatpush.msra.mxu0 0.0
        %358 = vmatpush.msra.mxu0 0.0
        %359 = vmatpush.msra.mxu0 0.0
        %360 = vmatpush.msra.mxu0 0.0
        %361 = vmatpush.msra.mxu0 0.0
        %362 = vmatpush.msra.mxu0 0.0
        %363 = vmatpush.msra.mxu0 0.0
        %364 = vmatpush.msra.mxu0 %v342
        %365 = vmatmul.f32.gmra.mxu0 %v347
        %v366 = vpop.f32.mrf.mxu0
        %v367 = vadd.f32 0.0, %v366
        %368 = vdwg.mxu0
        %v370 = vsel %vm246, %v232, 0
        %372 = vmatpush.msra.mxu0 0.0
        %373 = vmatpush.msra.mxu0 0.0
        %374 = vmatpush.msra.mxu0 0.0
        %375 = vmatpush.msra.mxu0 0.0
        %376 = vmatpush.msra.mxu0 0.0
        %377 = vmatpush.msra.mxu0 0.0
        %378 = vmatpush.msra.mxu0 0.0
        %379 = vmatpush.msra.mxu0 0.0
        %380 = vmatpush.msra.mxu0 0.0
        %381 = vmatpush.msra.mxu0 0.0
        %382 = vmatpush.msra.mxu0 0.0
        %383 = vmatpush.msra.mxu0 0.0
        %384 = vmatpush.msra.mxu0 0.0
        %385 = vmatpush.msra.mxu0 0.0
        %386 = vmatpush.msra.mxu0 0.0
        %387 = vmatpush.msra.mxu0 %v339
        %388 = vmatmul.f32.gmra.mxu0 %v370
        %v389 = vpop.f32.mrf.mxu0
        %v390 = vadd.f32 %v367, %v389
        %391 = vdwg.mxu0
        %v393 = vsel %vm246, %v234, 0
        %395 = vmatpush.msra.mxu0 0.0
        %396 = vmatpush.msra.mxu0 0.0
        %397 = vmatpush.msra.mxu0 0.0
        %398 = vmatpush.msra.mxu0 0.0
        %399 = vmatpush.msra.mxu0 0.0
        %400 = vmatpush.msra.mxu0 0.0
        %401 = vmatpush.msra.mxu0 0.0
        %402 = vmatpush.msra.mxu0 0.0
        %403 = vmatpush.msra.mxu0 0.0
        %404 = vmatpush.msra.mxu0 0.0
        %405 = vmatpush.msra.mxu0 0.0
        %406 = vmatpush.msra.mxu0 0.0
        %407 = vmatpush.msra.mxu0 0.0
        %408 = vmatpush.msra.mxu0 0.0
        %409 = vmatpush.msra.mxu0 0.0
        %410 = vmatpush.msra.mxu0 %v345
        %411 = vmatmul.f32.gmra.mxu0 %v393
        %v412 = vpop.f32.mrf.mxu0
        %v413 = vadd.f32 0.0, %v412
        %414 = vdwg.mxu0
        %v415 = vadd.f32 %v390, %v413
        %416 = vadd.xlane.f32.xlu0 %v415
        %v417 = vpop.xlane.xlu0 %416
        %v418 = vmul.f32 %v417, 0.0078125
        %v419 = vsub.f32 %v415, %v418
        %v420 = vmul.f32 %v419, %v419
        %421 = vadd.xlane.f32.xlu0 %v420
        %v422 = vpop.xlane.xlu0 %421
        %v423 = vmul.f32 %v422, 0.0078125
        %v424 = vadd.f32 %v423, 1e-05
        %v425 = vrsqrt.pop %v424
        %v426 = vmul.f32 %v425, %v424
        %v427 = vmul.f32 %v426, %v425
        %v428 = vmul.f32 0.5, %v427
        %v429 = vsub.f32 1.5, %v428
        %v430 = vmul.f32 %v425, %v429
        %vm431 = vweird.f32 %v424
        %vm432 = vweird.f32 %v425
        %vm433 = vmor %vm431, %vm432
        %v434 = vsel %vm433, %v425, %v430
        %v435 = vmul.f32 %v419, %v434
        %v436 = vadd.f32 %v235, %v435
        %437 = vst [vmem:[%s220] sm:$0xff] %v436
        %s438 = sand.u32 %s97, 1
        %s439 = scalar_lea.sflag [#allocation4], %s438
        %s440 = sand.u32 %s97, 1
        %s441 = smul.addr %s440, 8
        %s442 = scalar_lea.vmem [#allocation8], %s441
        // Predicated region
        $region45: #{tpu_custom_call.1} parent=31 // pred_check
          %p443 = pneg %p107
        $region46: #{tpu_custom_call.1} parent=31 // pred_check_branch
          %445 = sbr.rel (%p443) target = $region48
        $region47: #{tpu_custom_call.1} parent=31 // pred_region
          %447 = vsyncadd %s439, 0
          %s448 = smul.addr %s21, 8
          %s449 = scalar_lea.hbm %s3, %s448
          %s451 = sshll.u32 %s442, 4
          %s452 = int_to_ptr.vmem [resolvable:$true] %s451
          %s453 = sshll.u32 %s449, 4
          %s454 = int_to_ptr.hbm [resolvable:$true] %s453
          %456 = dma.vmem_to_hbm [thread:$0]  %s452, 128, %s454, %s439
        $region48: #{tpu_custom_call.1} parent=31 // pred_fallthru
          _
      $region32: #{tpu_custom_call.1} parent=5 // pred_fallthru
        _
      %p457 = scmp.le.s32.totalorder 2, %s16
      // Predicated region
      $region49: #{tpu_custom_call.1} parent=5 // pred_check
        %p458 = pneg %p457
      $region50: #{tpu_custom_call.1} parent=5 // pred_check_branch
        %460 = sbr.rel (%p458) target = $region52
      $region51: #{tpu_custom_call.1} parent=5 // pred_region
        %s461 = ssub.s32 %s16, 2
        // Predicated region
        $region53: #{tpu_custom_call.1} parent=51 // pred_check
          %p462 = pneg %p113
        $region54: #{tpu_custom_call.1} parent=51 // pred_check_branch
          %464 = sbr.rel (%p462) target = $region56
        $region55: #{tpu_custom_call.1} parent=51 // pred_region
          %s465 = sand.u32 %s98, 1
          %s466 = scalar_lea.sflag [#allocation4], %s465
          %s467 = sand.u32 %s98, 1
          %s468 = smul.addr %s467, 8
          %s469 = scalar_lea.vmem [#allocation8], %s468
          %471 = dma.done %s466, 128
        $region56: #{tpu_custom_call.1} parent=51 // pred_fallthru
          _
      $region52: #{tpu_custom_call.1} parent=5 // pred_fallthru
        _
    $region6: #{tpu_custom_call.1} parent=1 // loop_footer
      %s20 = sadd.s32 1, %s16
    $region7: #{tpu_custom_call.1} parent=1 // loop_footer_branch
      %15 = sbr.rel target = $region3
    $region8: #{tpu_custom_call.1} parent=1 // loop_exit
      _
    %472 = vsyncpa [#allocation3], 1
    %s473 = scalar_lea.sflag [#allocation3], 1
    %474 = vsyncpa %s473, 1
    %475 = vsyncpa [#allocation6], 1
    %476 = vsyncpa [#allocation4], 1
    %s477 = scalar_lea.sflag [#allocation4], 1
    %478 = vsyncpa %s477, 1

</llo_original>
